<compile_context>
chip_gen: v7x
topology: tpu7x:2x2x1
jax: 0.10.0
libtpu: 0.0.40
codegen_flags: <defaults>
</compile_context>

<pallas_src>
import jax
import jax.numpy as jnp
from jax.experimental import pallas as pl
from jax.experimental.pallas import tpu as pltpu

# ---------------- configuration (small, consistent with the module) ----------
B, T, N = 2, 32, 4            # batch, seq_len, enc_in (n_vars)
PATCH_LEN, STRIDE = 16, 8
PATCH_NUMS = (T - PATCH_LEN) // STRIDE + 2           # = 4
D_LLM = 128                   # llm_dim / embedding_dim
D_FF = 32
PRED_LEN = 16
HEAD_NF = D_FF * PATCH_NUMS   # = 128
ROWS = B * N                  # = 8 independent (batch, variable) series
EPS = 1e-5


# ---------------- single fused Pallas kernel ---------------------------------
def fused_forward_kernel(x_ref, w_ref, b_ref, o_ref):
    """Whole numeric forward in one invocation; everything stays in VMEM/vregs.

    x_ref : (B, T, N)          f32   raw input, PyTorch layout
    w_ref : (PRED_LEN, T)      bf16  collapsed effective weight (W_eff^T)
    b_ref : (PRED_LEN, 1)      f32   collapsed effective bias
    o_ref : (B, PRED_LEN, N)   f32   denormalized forecast, PyTorch layout
    """
    w = w_ref[...]                                     # (PRED_LEN, T) bf16
    b = b_ref[...]                                     # (PRED_LEN, 1) f32

    for bi in range(B):                                # static unroll, B tiny
        x = x_ref[bi]                                  # (T, N) f32

        # Normalize('norm'): per-series instance norm over time, affine=False,
        # biased variance, eps inside the sqrt (Time-LLM Normalize).
        mu = jnp.mean(x, axis=0, keepdims=True)        # (1, N)
        var = jnp.mean((x - mu) ** 2, axis=0, keepdims=True)
        sd = jnp.sqrt(var + EPS)                       # (1, N)
        xn = (x - mu) / sd                             # (T, N)

        # Collapsed pad+unfold -> patch embedding -> [identity LLM] -> d_ff
        # slice -> FlattenHead: ONE small bf16 MXU matmul (f32 accumulation).
        head = jnp.dot(w, xn.astype(jnp.bfloat16),
                       preferred_element_type=jnp.float32)   # (PRED_LEN, N)

        # bias + Normalize('denorm') fused as an FMA; stored directly in the
        # final (B, pred_len, N) layout -> no post-kernel transpose.
        o_ref[bi] = (head + b) * sd + mu


# ---------------- one-time host-side weight collapse --------------------------
def prepare_effective_params(w_pe, b_pe, w_head, b_head):
    """Collapse pad+unfold -> W_pe[:, :d_ff] -> FlattenHead into (W_eff^T, b_eff).

    Exact while the LLM stand-in is identity.  Called ONCE, outside the jitted
    per-step forward.
    """
    w_pe_ff = w_pe[:, :D_FF].astype(jnp.float32)                 # (L, D_FF)
    # FlattenHead flattens (d_ff, patch_nums) with d_ff outer / patch inner:
    # flat[:, f*P + p]  ==>  per-patch weight  W_head_p[f, :] = w_head[f*P + p, :]
    w_head_pf = jnp.transpose(
        w_head.astype(jnp.float32).reshape(D_FF, PATCH_NUMS, PRED_LEN),
        (1, 0, 2))                                               # (P, D_FF, O)

    # Per-patch collapsed weight A_p = W_pe[:, :d_ff] @ W_head_p : (P, L, O)
    a = jnp.einsum('lf,pfo->plo', w_pe_ff, w_head_pf)

    # Scatter-add each patch window onto the replication-padded time axis.
    w_eff_pad = jnp.zeros((T + STRIDE, PRED_LEN), jnp.float32)
    for p in range(PATCH_NUMS):
        s = p * STRIDE
        w_eff_pad = w_eff_pad.at[s:s + PATCH_LEN, :].add(a[p])

    # Fold the replication pad: padded steps all replicate x[:, T-1].
    w_eff = w_eff_pad[:T, :].at[T - 1, :].add(w_eff_pad[T:, :].sum(axis=0))

    # Effective bias: only b_pe[:d_ff] survives the d_ff slice.
    b_eff = jnp.einsum('f,pfo->o', b_pe[:D_FF].astype(jnp.float32),
                       w_head_pf) + b_head.astype(jnp.float32)

    # Kernel contracts over time from the left: head = W_eff^T @ xn_(T,N).
    w_effT = jnp.transpose(w_eff).astype(jnp.bfloat16)           # (O, T) bf16
    b_eff_col = b_eff.reshape(PRED_LEN, 1).astype(jnp.float32)   # (O, 1)
    return w_effT, b_eff_col


# ---------------- wrapper (single pallas_call per step) -----------------------
def model_forward(x_enc, w_effT, b_eff_col):
    """x_enc: (B, T, N) f32 -> forecast (B, PRED_LEN, N) f32."""
    vmem = pltpu.MemorySpace.VMEM
    return pl.pallas_call(
        fused_forward_kernel,
        out_shape=jax.ShapeDtypeStruct((B, PRED_LEN, N), jnp.float32),
        in_specs=[pl.BlockSpec(memory_space=vmem),   # x_enc   (<1 KiB)
                  pl.BlockSpec(memory_space=vmem),   # W_eff^T (1 KiB bf16)
                  pl.BlockSpec(memory_space=vmem)],  # b_eff
        out_specs=pl.BlockSpec(memory_space=vmem),
    )(x_enc, w_effT, b_eff_col)


# ---------------- pure-JAX structured reference (correctness check) ----------
def reference_forward(x_enc, w_pe, b_pe, w_head, b_head):
    x = jnp.transpose(x_enc, (0, 2, 1)).reshape(ROWS, T)
    mu = jnp.mean(x, axis=-1, keepdims=True)
    var = jnp.mean((x - mu) ** 2, axis=-1, keepdims=True)
    sd = jnp.sqrt(var + EPS)
    xn = (x - mu) / sd
    x_pad = jnp.concatenate([xn, jnp.repeat(xn[:, -1:], STRIDE, axis=1)], axis=1)
    idx = (jnp.arange(PATCH_NUMS)[:, None] * STRIDE
           + jnp.arange(PATCH_LEN)[None, :])
    patches = x_pad[:, idx]                                      # (ROWS, P, L)
    emb = jnp.einsum('rpl,ld->rpd', patches.astype(jnp.bfloat16),
                     w_pe.astype(jnp.bfloat16),
                     preferred_element_type=jnp.float32) + b_pe[None, None, :]
    dec = emb[:, :, :D_FF]                                       # (ROWS, P, D_FF)
    flat = jnp.transpose(dec, (0, 2, 1)).reshape(ROWS, HEAD_NF)  # f outer, p inner
    head_out = flat @ w_head + b_head[None, :]
    out = (head_out * sd + mu).reshape(B, N, PRED_LEN)
    return jnp.transpose(out, (0, 2, 1))


# ---------------- main --------------------------------------------------------
if __name__ == "__main__":
    key = jax.random.PRNGKey(0)
    k_x, k_pe, k_head = jax.random.split(key, 3)

    x_enc = jax.random.normal(k_x, (B, T, N), dtype=jnp.float32)

    # deterministic parameter init (shapes from the module's __init__)
    w_pe = 0.02 * jax.random.normal(k_pe, (PATCH_LEN, D_LLM), dtype=jnp.float32)
    b_pe = jnp.zeros((D_LLM,), dtype=jnp.float32)
    w_head = 0.02 * jax.random.normal(k_head, (HEAD_NF, PRED_LEN),
                                      dtype=jnp.float32)
    b_head = jnp.zeros((PRED_LEN,), dtype=jnp.float32)

    # One-time weight collapse (outside the jitted per-step forward).
    w_effT, b_eff_col = prepare_effective_params(w_pe, b_pe, w_head, b_head)

    fwd = jax.jit(model_forward)
    out = jax.block_until_ready(fwd(x_enc, w_effT, b_eff_col))

    ref = jax.block_until_ready(
        reference_forward(x_enc, w_pe, b_pe, w_head, b_head))

    assert out.shape == (B, PRED_LEN, N), out.shape
    assert jnp.isfinite(out).all()
    assert jnp.allclose(out, ref, atol=1e-2, rtol=1e-2), (
        float(jnp.max(jnp.abs(out - ref))))
    print("KERNEL_OK")
</pallas_src>

<mosaic_0001>
module attributes {stable_mosaic.version = 11 : i64} {
  func.func @fused_forward_kernel(%arg0: memref<2x32x4xf32, #tpu.memory_space<vmem>>, %arg1: memref<16x32xbf16, #tpu.memory_space<vmem>>, %arg2: memref<16x1xf32, #tpu.memory_space<vmem>>, %arg3: memref<2x16x4xf32, #tpu.memory_space<vmem>>) attributes {dimension_semantics = [], scalar_prefetch = 0 : i64, scratch_operands = 0 : i64, tpu.core_type = #tpu.core_type<tc>} {
    %c0 = arith.constant 0 : index
    %c0_0 = arith.constant 0 : index
    %0 = vector.load %arg1[%c0, %c0_0] : memref<16x32xbf16, #tpu.memory_space<vmem>>, vector<16x32xbf16>
    %c0_1 = arith.constant 0 : index
    %c0_2 = arith.constant 0 : index
    %1 = vector.load %arg2[%c0_1, %c0_2] : memref<16x1xf32, #tpu.memory_space<vmem>>, vector<16x1xf32>
    %c0_3 = arith.constant 0 : index
    %c0_4 = arith.constant 0 : index
    %c0_5 = arith.constant 0 : index
    %2 = vector.load %arg0[%c0_3, %c0_4, %c0_5] : memref<2x32x4xf32, #tpu.memory_space<vmem>>, vector<1x32x4xf32>
    %3 = vector.shape_cast %2 : vector<1x32x4xf32> to vector<32x4xf32>
    %cst = arith.constant dense<0.000000e+00> : vector<4xf32>
    %4 = vector.multi_reduction <add>, %3, %cst [0] : vector<32x4xf32> to vector<4xf32>
    %5 = vector.shape_cast %4 : vector<4xf32> to vector<1x4xf32>
    %cst_6 = arith.constant 3.200000e+01 : f32
    %6 = vector.broadcast %cst_6 : f32 to vector<1x4xf32>
    %7 = arith.divf %5, %6 : vector<1x4xf32>
    %8 = vector.broadcast %7 : vector<1x4xf32> to vector<32x4xf32>
    %9 = arith.subf %3, %8 : vector<32x4xf32>
    %10 = arith.mulf %9, %9 : vector<32x4xf32>
    %cst_7 = arith.constant dense<0.000000e+00> : vector<4xf32>
    %11 = vector.multi_reduction <add>, %10, %cst_7 [0] : vector<32x4xf32> to vector<4xf32>
    %12 = vector.shape_cast %11 : vector<4xf32> to vector<1x4xf32>
    %cst_8 = arith.constant 3.200000e+01 : f32
    %13 = vector.broadcast %cst_8 : f32 to vector<1x4xf32>
    %14 = arith.divf %12, %13 : vector<1x4xf32>
    %cst_9 = arith.constant 9.99999974E-6 : f32
    %15 = vector.broadcast %cst_9 : f32 to vector<1x4xf32>
    %16 = arith.addf %14, %15 : vector<1x4xf32>
    %17 = math.sqrt %16 : vector<1x4xf32>
    %18 = vector.broadcast %7 : vector<1x4xf32> to vector<32x4xf32>
    %19 = arith.subf %3, %18 : vector<32x4xf32>
    %20 = vector.broadcast %17 : vector<1x4xf32> to vector<32x4xf32>
    %21 = arith.divf %19, %20 : vector<32x4xf32>
    %22 = arith.truncf %21 : vector<32x4xf32> to vector<32x4xbf16>
    %cst_10 = arith.constant dense<0.000000e+00> : vector<16x4xf32>
    %23 = tpu.matmul %0, %22, %cst_10 {dimension_numbers = #tpu.dot_dimension_numbers<[1], [0], [0], [1], [0, 0, 1, 1], [], []>} : vector<16x32xbf16>, vector<32x4xbf16>, vector<16x4xf32> -> vector<16x4xf32>
    %24 = vector.broadcast %1 : vector<16x1xf32> to vector<16x4xf32>
    %25 = arith.addf %23, %24 : vector<16x4xf32>
    %26 = vector.broadcast %17 : vector<1x4xf32> to vector<16x4xf32>
    %27 = arith.mulf %25, %26 : vector<16x4xf32>
    %28 = vector.broadcast %7 : vector<1x4xf32> to vector<16x4xf32>
    %29 = arith.addf %27, %28 : vector<16x4xf32>
    %c0_11 = arith.constant 0 : index
    %c0_12 = arith.constant 0 : index
    %c0_13 = arith.constant 0 : index
    %30 = vector.load %arg3[%c0_11, %c0_12, %c0_13] : memref<2x16x4xf32, #tpu.memory_space<vmem>>, vector<1x16x4xf32>
    %31 = vector.shape_cast %30 : vector<1x16x4xf32> to vector<16x4xf32>
    %32 = vector.shape_cast %29 : vector<16x4xf32> to vector<1x16x4xf32>
    tpu.vector_store %arg3[%c0_11, %c0_12, %c0_13], %32 {strides = array<i32>} : memref<2x16x4xf32, #tpu.memory_space<vmem>>, vector<1x16x4xf32>,
    %c1 = arith.constant 1 : index
    %c0_14 = arith.constant 0 : index
    %c0_15 = arith.constant 0 : index
    %33 = vector.load %arg0[%c1, %c0_14, %c0_15] : memref<2x32x4xf32, #tpu.memory_space<vmem>>, vector<1x32x4xf32>
    %34 = vector.shape_cast %33 : vector<1x32x4xf32> to vector<32x4xf32>
    %cst_16 = arith.constant dense<0.000000e+00> : vector<4xf32>
    %35 = vector.multi_reduction <add>, %34, %cst_16 [0] : vector<32x4xf32> to vector<4xf32>
    %36 = vector.shape_cast %35 : vector<4xf32> to vector<1x4xf32>
    %cst_17 = arith.constant 3.200000e+01 : f32
    %37 = vector.broadcast %cst_17 : f32 to vector<1x4xf32>
    %38 = arith.divf %36, %37 : vector<1x4xf32>
    %39 = vector.broadcast %38 : vector<1x4xf32> to vector<32x4xf32>
    %40 = arith.subf %34, %39 : vector<32x4xf32>
    %41 = arith.mulf %40, %40 : vector<32x4xf32>
    %cst_18 = arith.constant dense<0.000000e+00> : vector<4xf32>
    %42 = vector.multi_reduction <add>, %41, %cst_18 [0] : vector<32x4xf32> to vector<4xf32>
    %43 = vector.shape_cast %42 : vector<4xf32> to vector<1x4xf32>
    %cst_19 = arith.constant 3.200000e+01 : f32
    %44 = vector.broadcast %cst_19 : f32 to vector<1x4xf32>
    %45 = arith.divf %43, %44 : vector<1x4xf32>
    %cst_20 = arith.constant 9.99999974E-6 : f32
    %46 = vector.broadcast %cst_20 : f32 to vector<1x4xf32>
    %47 = arith.addf %45, %46 : vector<1x4xf32>
    %48 = math.sqrt %47 : vector<1x4xf32>
    %49 = vector.broadcast %38 : vector<1x4xf32> to vector<32x4xf32>
    %50 = arith.subf %34, %49 : vector<32x4xf32>
    %51 = vector.broadcast %48 : vector<1x4xf32> to vector<32x4xf32>
    %52 = arith.divf %50, %51 : vector<32x4xf32>
    %53 = arith.truncf %52 : vector<32x4xf32> to vector<32x4xbf16>
    %cst_21 = arith.constant dense<0.000000e+00> : vector<16x4xf32>
    %54 = tpu.matmul %0, %53, %cst_21 {dimension_numbers = #tpu.dot_dimension_numbers<[1], [0], [0], [1], [0, 0, 1, 1], [], []>} : vector<16x32xbf16>, vector<32x4xbf16>, vector<16x4xf32> -> vector<16x4xf32>
    %55 = vector.broadcast %1 : vector<16x1xf32> to vector<16x4xf32>
    %56 = arith.addf %54, %55 : vector<16x4xf32>
    %57 = vector.broadcast %48 : vector<1x4xf32> to vector<16x4xf32>
    %58 = arith.mulf %56, %57 : vector<16x4xf32>
    %59 = vector.broadcast %38 : vector<1x4xf32> to vector<16x4xf32>
    %60 = arith.addf %58, %59 : vector<16x4xf32>
    %c1_22 = arith.constant 1 : index
    %c0_23 = arith.constant 0 : index
    %c0_24 = arith.constant 0 : index
    %61 = vector.load %arg3[%c1_22, %c0_23, %c0_24] : memref<2x16x4xf32, #tpu.memory_space<vmem>>, vector<1x16x4xf32>
    %62 = vector.shape_cast %61 : vector<1x16x4xf32> to vector<16x4xf32>
    %63 = vector.shape_cast %60 : vector<16x4xf32> to vector<1x16x4xf32>
    tpu.vector_store %arg3[%c1_22, %c0_23, %c0_24], %63 {strides = array<i32>} : memref<2x16x4xf32, #tpu.memory_space<vmem>>, vector<1x16x4xf32>,
    return
  }
}

</mosaic_0001>

<llo_original>
// kernel: model_forward.1
$region0: #{model_forward.1}
  #allocation0 [shape = 'u32[]', space=smem, size = 0x4, offset = 0x4, fixed_abs, tag = 'smem constant byte address 0x4 - core index']
  #allocation1 [shape = 'u32[144,128]{1,0:T(1,128)}', space=vmem, size = 0x12000, scoped, tag = 'internal scratch']
  %s0 = inlined_call_operand.vmem [shape: f32[2,32,4], index: 0, kind: input, shape index: {}]
  %s1 = inlined_call_operand.vmem [shape: bf16[16,32], index: 1, kind: input, shape index: {}]
  %s2 = inlined_call_operand.vmem [shape: f32[16,1], index: 2, kind: input, shape index: {}]
  %s3 = inlined_call_operand.vmem [shape: f32[2,16,4], index: 3, kind: output, shape index: {}]
  %s4 = sld [smem:[#allocation0]]
  $region22: #{model_forward.1} parent=0
    _
  %s6 = ssub.s32 1, %s4
  %s7 = scalar_select 0, %s6, %s4
  // Predicated region
  $region2: #{model_forward.1} parent=0 // pred_check
    _
  $region3: #{model_forward.1} parent=0 // pred_check_branch
    %9 = sbr.rel (0) target = $region5
  $region4: #{model_forward.1} parent=0 // pred_region
    _
  $region5: #{model_forward.1} parent=0 // pred_fallthru
    _
  // Predicated region
  $region6: #{model_forward.1} parent=0 // pred_check
    _
  $region7: #{model_forward.1} parent=0 // pred_check_branch
    %11 = sbr.rel (0) target = $region9
  $region8: #{model_forward.1} parent=0 // pred_region
    _
  $region9: #{model_forward.1} parent=0 // pred_fallthru
    _
  // Predicated region
  $region10: #{model_forward.1} parent=0 // pred_check
    _
  $region11: #{model_forward.1} parent=0 // pred_check_branch
    %13 = sbr.rel (0) target = $region13
  $region12: #{model_forward.1} parent=0 // pred_region
    _
  $region13: #{model_forward.1} parent=0 // pred_fallthru
    _
  %v15 = vld [vmem:[%s1] sm:$0xf]
  %v16 = vld [vmem:[%s1 + $0x4] sm:$0xf]
  %v17 = vld [vmem:[%s2] sm:$0xff]
  %v18 = vld [vmem:[%s2 + $0x8] sm:$0xff]
  %v19 = vld [vmem:[%s0] sm:$0xff]
  %v20 = vld [vmem:[%s0 + $0x8] sm:$0xff]
  %v21 = vld [vmem:[%s0 + $0x10] sm:$0xff]
  %v22 = vld [vmem:[%s0 + $0x18] sm:$0xff]
  %vm23 = vcmask 31744
  %v24 = vsel %vm23, %v19, 0.0
  %v25 = vsel %vm23, %v20, 0.0
  %v26 = vadd.f32 %v24, %v25
  %v27 = vsel %vm23, %v21, 0.0
  %v28 = vadd.f32 %v26, %v27
  %v29 = vsel %vm23, %v22, 0.0
  %v30 = vadd.f32 %v28, %v29
  %v31 = vrot.slane %v30, 4
  %v32 = vadd.f32 %v30, %v31
  %v33 = vrot.slane %v32, 2
  %v34 = vadd.f32 %v32, %v33
  %v35 = vrot.slane %v34, 1
  %v36 = vadd.f32 %v34, %v35
  %v37 = vrcp.pop 32.0
  %v38 = vmul.f32 %v36, %v37
  %v39 = vsub.f32 %v19, %v38
  %v40 = vsub.f32 %v20, %v38
  %v41 = vsub.f32 %v21, %v38
  %v42 = vsub.f32 %v22, %v38
  %v43 = vmul.f32 %v39, %v39
  %v44 = vmul.f32 %v40, %v40
  %v45 = vmul.f32 %v41, %v41
  %v46 = vmul.f32 %v42, %v42
  %v47 = vsel %vm23, %v43, 0.0
  %v48 = vsel %vm23, %v44, 0.0
  %v49 = vadd.f32 %v47, %v48
  %v50 = vsel %vm23, %v45, 0.0
  %v51 = vadd.f32 %v49, %v50
  %v52 = vsel %vm23, %v46, 0.0
  %v53 = vadd.f32 %v51, %v52
  %v54 = vrot.slane %v53, 4
  %v55 = vadd.f32 %v53, %v54
  %v56 = vrot.slane %v55, 2
  %v57 = vadd.f32 %v55, %v56
  %v58 = vrot.slane %v57, 1
  %v59 = vadd.f32 %v57, %v58
  %v60 = vmul.f32 %v59, %v37
  %v61 = vadd.f32 %v60, 1e-05
  %v62 = vrsqrt.pop %v61
  %v63 = vmul.f32 %v61, %v62
  %vm64 = vcmp.eq.f32.partialorder %v61, inf
  %v65 = vsel %vm64, %v61, %v63
  %vm66 = vcmp.eq.f32.partialorder %v61, 0.0
  %v67 = vand.u32 %v61, 2147483648
  %v68 = vsel %vm66, %v67, %v65
  %v69 = vrcp.pop %v68
  %v70 = vmul.f32 %v39, %v69
  %v71 = vmul.f32 %v40, %v69
  %v72 = vmul.f32 %v41, %v69
  %v73 = vmul.f32 %v42, %v69
  %v74 = vpack.c.bf16 %v71, %v70
  %v75 = vpack.c.bf16 %v73, %v72
  %77 = vset.pattern.permute.xlu0 0
  %78 = vperm.xlu0 %77, %v17
  %v79 = vpop.permute.xlu0 %78
  %82 = vset.pattern.permute.xlu0 0
  %83 = vperm.xlu0 %82, %v18
  %v84 = vpop.permute.xlu0 %83
  %v88 = vunpack.c.l.b16 %v15
  %v89 = vunpack.c.l.b16 %v16
  %v90 = vpack.c.b16 %v89, %v88
  %vm91 = vcmask 261120
  %v93 = vsel %vm91, %v90, 0
  %95 = vmatprep.subr.bf16.mxu0 0
  %96 = vmatpush1.bf16.msra.mxu0 %v74
  %97 = vmatprep.subr.bf16.mxu0 0
  %98 = vmatpush1.bf16.msra.mxu0 %v75
  %99 = vmatprep.subr.bf16.mxu0 0
  %100 = vmatpush1.bf16.msra.mxu0 0
  %101 = vmatprep.subr.bf16.mxu0 0
  %102 = vmatpush1.bf16.msra.mxu0 0
  %103 = vmatprep.subr.bf16.mxu0 0
  %104 = vmatpush1.bf16.msra.mxu0 0
  %105 = vmatprep.subr.bf16.mxu0 0
  %106 = vmatpush1.bf16.msra.mxu0 0
  %107 = vmatprep.subr.bf16.mxu0 0
  %108 = vmatpush1.bf16.msra.mxu0 0
  %109 = vmatprep.subr.bf16.mxu0 0
  %110 = vmatpush1.bf16.msra.mxu0 0
  %111 = vmatprep.subr.bf16.mxu0 0
  %112 = vmatpush1.bf16.msra.mxu0 0
  %113 = vmatprep.subr.bf16.mxu0 0
  %114 = vmatpush1.bf16.msra.mxu0 0
  %115 = vmatprep.subr.bf16.mxu0 0
  %116 = vmatpush1.bf16.msra.mxu0 0
  %117 = vmatprep.subr.bf16.mxu0 0
  %118 = vmatpush1.bf16.msra.mxu0 0
  %119 = vmatprep.subr.bf16.mxu0 0
  %120 = vmatpush1.bf16.msra.mxu0 0
  %121 = vmatprep.subr.bf16.mxu0 0
  %122 = vmatpush1.bf16.msra.mxu0 0
  %123 = vmatprep.subr.bf16.mxu0 0
  %124 = vmatpush1.bf16.msra.mxu0 0
  %125 = vmatprep.subr.bf16.mxu0 0
  %126 = vmatpush1.bf16.msra.mxu0 0
  %127 = vmatprep.mubr.bf16.mxu0 0
  %128 = vmatmul.mubr.bf16.gmra.mrb[0].mxu0 %v93
  %v129 = vpop.f32.mrb[0].mxu0
  %v130 = vadd.f32 %v79, %v129
  %v131 = vpop.f32.mrb[0].mxu0
  %v132 = vpop.f32.mrb[0].mxu0
  %v133 = vadd.f32 %v84, %v132
  %v134 = vpop.f32.mrb[0].mxu0
  %135 = vdwg.mxu0
  %v136 = vmul.f32 %v130, %v68
  %v137 = vmul.f32 %v133, %v68
  %v138 = vadd.f32 %v136, %v38
  %v139 = vadd.f32 %v137, %v38
  %140 = vst.msk [vmem:[%s3] sm:$0xff] %vm23, %v138
  %141 = vst.msk [vmem:[%s3 + $0x8] sm:$0xff] %vm23, %v139
  %s142 = scalar_lea.vmem %s0, 32
  %v143 = vld [vmem:[%s142] sm:$0xff]
  %v144 = vld [vmem:[%s142 + $0x8] sm:$0xff]
  %v145 = vld [vmem:[%s142 + $0x10] sm:$0xff]
  %v146 = vld [vmem:[%s142 + $0x18] sm:$0xff]
  %v147 = vsel %vm23, %v143, 0.0
  %v148 = vsel %vm23, %v144, 0.0
  %v149 = vadd.f32 %v147, %v148
  %v150 = vsel %vm23, %v145, 0.0
  %v151 = vadd.f32 %v149, %v150
  %v152 = vsel %vm23, %v146, 0.0
  %v153 = vadd.f32 %v151, %v152
  %v154 = vrot.slane %v153, 4
  %v155 = vadd.f32 %v153, %v154
  %v156 = vrot.slane %v155, 2
  %v157 = vadd.f32 %v155, %v156
  %v158 = vrot.slane %v157, 1
  %v159 = vadd.f32 %v157, %v158
  %v160 = vmul.f32 %v159, %v37
  %v161 = vsub.f32 %v143, %v160
  %v162 = vsub.f32 %v144, %v160
  %v163 = vsub.f32 %v145, %v160
  %v164 = vsub.f32 %v146, %v160
  %v165 = vmul.f32 %v161, %v161
  %v166 = vmul.f32 %v162, %v162
  %v167 = vmul.f32 %v163, %v163
  %v168 = vmul.f32 %v164, %v164
  %v169 = vsel %vm23, %v165, 0.0
  %v170 = vsel %vm23, %v166, 0.0
  %v171 = vadd.f32 %v169, %v170
  %v172 = vsel %vm23, %v167, 0.0
  %v173 = vadd.f32 %v171, %v172
  %v174 = vsel %vm23, %v168, 0.0
  %v175 = vadd.f32 %v173, %v174
  %v176 = vrot.slane %v175, 4
  %v177 = vadd.f32 %v175, %v176
  %v178 = vrot.slane %v177, 2
  %v179 = vadd.f32 %v177, %v178
  %v180 = vrot.slane %v179, 1
  %v181 = vadd.f32 %v179, %v180
  %v182 = vmul.f32 %v181, %v37
  %v183 = vadd.f32 %v182, 1e-05
  %v184 = vrsqrt.pop %v183
  %v185 = vmul.f32 %v183, %v184
  %vm186 = vcmp.eq.f32.partialorder %v183, inf
  %v187 = vsel %vm186, %v183, %v185
  %vm188 = vcmp.eq.f32.partialorder %v183, 0.0
  %v189 = vand.u32 %v183, 2147483648
  %v190 = vsel %vm188, %v189, %v187
  %v191 = vrcp.pop %v190
  %v192 = vmul.f32 %v161, %v191
  %v193 = vmul.f32 %v162, %v191
  %v194 = vmul.f32 %v163, %v191
  %v195 = vmul.f32 %v164, %v191
  %v196 = vpack.c.bf16 %v193, %v192
  %v197 = vpack.c.bf16 %v195, %v194
  %198 = vmatprep.subr.bf16.mxu0 0
  %199 = vmatpush1.bf16.msra.mxu0 %v196
  %200 = vmatprep.subr.bf16.mxu0 0
  %201 = vmatpush1.bf16.msra.mxu0 %v197
  %202 = vmatprep.subr.bf16.mxu0 0
  %203 = vmatpush1.bf16.msra.mxu0 0
  %204 = vmatprep.subr.bf16.mxu0 0
  %205 = vmatpush1.bf16.msra.mxu0 0
  %206 = vmatprep.subr.bf16.mxu0 0
  %207 = vmatpush1.bf16.msra.mxu0 0
  %208 = vmatprep.subr.bf16.mxu0 0
  %209 = vmatpush1.bf16.msra.mxu0 0
  %210 = vmatprep.subr.bf16.mxu0 0
  %211 = vmatpush1.bf16.msra.mxu0 0
  %212 = vmatprep.subr.bf16.mxu0 0
  %213 = vmatpush1.bf16.msra.mxu0 0
  %214 = vmatprep.subr.bf16.mxu0 0
  %215 = vmatpush1.bf16.msra.mxu0 0
  %216 = vmatprep.subr.bf16.mxu0 0
  %217 = vmatpush1.bf16.msra.mxu0 0
  %218 = vmatprep.subr.bf16.mxu0 0
  %219 = vmatpush1.bf16.msra.mxu0 0
  %220 = vmatprep.subr.bf16.mxu0 0
  %221 = vmatpush1.bf16.msra.mxu0 0
  %222 = vmatprep.subr.bf16.mxu0 0
  %223 = vmatpush1.bf16.msra.mxu0 0
  %224 = vmatprep.subr.bf16.mxu0 0
  %225 = vmatpush1.bf16.msra.mxu0 0
  %226 = vmatprep.subr.bf16.mxu0 0
  %227 = vmatpush1.bf16.msra.mxu0 0
  %228 = vmatprep.subr.bf16.mxu0 0
  %229 = vmatpush1.bf16.msra.mxu0 0
  %230 = vmatprep.mubr.bf16.mxu0 0
  %231 = vmatmul.mubr.bf16.gmra.mrb[0].mxu0 %v93
  %v232 = vpop.f32.mrb[0].mxu0
  %v233 = vadd.f32 %v79, %v232
  %v234 = vpop.f32.mrb[0].mxu0
  %v235 = vpop.f32.mrb[0].mxu0
  %v236 = vadd.f32 %v84, %v235
  %v237 = vpop.f32.mrb[0].mxu0
  %238 = vdwg.mxu0
  %v239 = vmul.f32 %v233, %v190
  %v240 = vmul.f32 %v236, %v190
  %v241 = vadd.f32 %v239, %v160
  %v242 = vadd.f32 %v240, %v160
  %s243 = scalar_lea.vmem %s3, 16
  %244 = vst.msk [vmem:[%s243] sm:$0xff] %vm23, %v241
  %245 = vst.msk [vmem:[%s243 + $0x8] sm:$0xff] %vm23, %v242
  // Predicated region
  $region14: #{model_forward.1} parent=0 // pred_check
    _
  $region15: #{model_forward.1} parent=0 // pred_check_branch
    %247 = sbr.rel (0) target = $region17
  $region16: #{model_forward.1} parent=0 // pred_region
    _
  $region17: #{model_forward.1} parent=0 // pred_fallthru
    _
  // Predicated region
  $region18: #{model_forward.1} parent=0 // pred_check
    _
  $region19: #{model_forward.1} parent=0 // pred_check_branch
    %249 = sbr.rel (0) target = $region21
  $region20: #{model_forward.1} parent=0 // pred_region
    _
  $region21: #{model_forward.1} parent=0 // pred_fallthru
    _

</llo_original>
